<compile_context>
chip_gen: v7x
topology: tpu7x:2x2x1
jax: 0.10.0
libtpu: 0.0.40
codegen_flags: <defaults>
</compile_context>

<pallas_src>
import functools

import jax
import jax.numpy as jnp
from jax.experimental import pallas as pl
from jax.experimental.pallas import tpu as pltpu


# ---------------------------------------------------------------------------
# helpers
# ---------------------------------------------------------------------------
def _round_up(n: int, m: int) -> int:
    return ((n + m - 1) // m) * m


_LANE = 128          # lane width: pad all feature dims to this
_SUBLANE_BF16 = 16   # bf16 packs 16 rows per vreg: pad batch tiles to this


def _is_v5_tpu() -> bool:
    try:
        return "v5" in jax.devices()[0].device_kind.lower()
    except Exception:
        return False


def _physical_vmem_bytes() -> int:
    try:
        return int(pltpu.get_tpu_info().vmem_capacity_bytes)
    except Exception:
        return 64 << 20          # conservative (v7x per-TC)


def _param_spec(shape):
    """Grid-invariant block: single-buffer it (no point double-buffering a
    block whose index_map is constant across the grid)."""
    try:
        return pl.BlockSpec(shape, lambda i: (0, 0),
                            pipeline_mode=pl.Buffered(1))
    except Exception:            # older jax without pipeline_mode/Buffered
        return pl.BlockSpec(shape, lambda i: (0, 0))


def _select_tile_m(batch: int, max_out_pad: int) -> int:
    # 256-row tiles feed v6e/v7x's 256-wide MXU and amortize per-step
    # overhead; v5* has a 128-wide MXU so 128 is enough there.
    tm_cap = 128 if _is_v5_tpu() else 256
    # vreg-pressure guard: keep the f32 intermediate (tm x out_pad) within
    # ~half the register file (64 vregs * 4 KiB) to avoid VMEM spill traffic.
    while tm_cap > _SUBLANE_BF16 and tm_cap * max_out_pad * 4 > 128 * 1024:
        tm_cap //= 2
    if batch >= tm_cap:
        return tm_cap
    return min(_round_up(batch, _SUBLANE_BF16), tm_cap)


# ---------------------------------------------------------------------------
# Pallas kernel: fused MLP chain  y = actN(...act0(x @ W0 + b0)... @ WN + bN)
# All layers execute in a single kernel body; intermediates live in vregs.
# ---------------------------------------------------------------------------
def _fused_mlp_kernel(*refs, num_layers: int, activations: tuple,
                      compute_dtype):
    x_ref = refs[0]
    o_ref = refs[-1]
    param_refs = refs[1:-1]          # w0, b0, w1, b1, ...

    # x arrives in f32; cast to the MXU dtype in-kernel (VPU cast is hidden
    # under the MXU) instead of materializing a padded bf16 copy in HBM.
    h = x_ref[...].astype(compute_dtype)
    y = None
    for li in range(num_layers):
        w = param_refs[2 * li][...]          # (in_pad, out_pad), bf16
        b = param_refs[2 * li + 1][...]      # (1, out_pad), f32
        # MXU matmul with f32 accumulation; epilogue stays f32 (v5e-safe).
        y = jnp.dot(h, w, preferred_element_type=jnp.float32) + b
        if activations[li]:
            y = jnp.maximum(y, 0.0)
        if li < num_layers - 1:
            h = y.astype(compute_dtype)
    o_ref[...] = y.astype(o_ref.dtype)


def _fused_mlp_impl(x, params, activations, out_features, compute_dtype):
    """params: tuple of (w_padded, b_padded) per layer (already lane-padded,
    weights bf16, biases f32)."""
    batch, in_f = x.shape
    num_layers = len(params)
    in_pad = params[0][0].shape[0]
    out_pad = params[-1][0].shape[1]
    max_out_pad = max(w.shape[1] for w, _ in params)

    tm = _select_tile_m(batch, max_out_pad)
    padded_batch = _round_up(batch, tm)

    # Pad only when necessary; keep x in f32 (cast happens inside the kernel).
    pad_m = padded_batch - batch
    pad_k = in_pad - in_f
    x_p = jnp.pad(x, ((0, pad_m), (0, pad_k))) if (pad_m or pad_k) else x

    kernel = functools.partial(
        _fused_mlp_kernel,
        num_layers=num_layers,
        activations=tuple(activations),
        compute_dtype=compute_dtype,
    )

    in_specs = [pl.BlockSpec((tm, in_pad), lambda i: (i, 0))]
    flat_params = []
    for (w, b) in params:
        in_specs.append(_param_spec(w.shape))
        in_specs.append(_param_spec(b.shape))
        flat_params.extend([w, b])

    # --- VMEM budget: params (single-buffered) + double-buffered x/out tiles
    #     + f32 activation slack, clamped to physical VMEM. -----------------
    param_bytes = sum(int(w.size) * w.dtype.itemsize +
                      int(b.size) * b.dtype.itemsize for w, b in params)
    io_bytes = 2 * tm * in_pad * x_p.dtype.itemsize + 2 * tm * out_pad * 4
    act_slack = num_layers * tm * max_out_pad * 4
    vmem_need = param_bytes + io_bytes + act_slack + (2 << 20)
    vmem_limit = int(min(max(vmem_need, 16 << 20), _physical_vmem_bytes()))
    # TODO(synk): if param_bytes ever exceeds the per-TC VMEM budget (v7x:
    # 64 MiB), switch to a K/N-tiled grid axis with an f32 accumulator
    # scratch instead of whole-weight-resident blocks.

    flops = 2 * padded_batch * sum(w.shape[0] * w.shape[1] for w, _ in params)
    bytes_accessed = (int(x_p.size) * x_p.dtype.itemsize + param_bytes +
                      padded_batch * out_pad * x.dtype.itemsize)

    y = pl.pallas_call(
        kernel,
        out_shape=jax.ShapeDtypeStruct((padded_batch, out_pad), x.dtype),
        grid=(padded_batch // tm,),
        in_specs=in_specs,
        out_specs=pl.BlockSpec((tm, out_pad), lambda i: (i, 0)),
        compiler_params=pltpu.CompilerParams(
            dimension_semantics=("parallel",),
            vmem_limit_bytes=vmem_limit),
        cost_estimate=pl.CostEstimate(flops=flops, transcendentals=0,
                                      bytes_accessed=bytes_accessed),
    )(x_p, *flat_params)

    if padded_batch == batch and out_pad == out_features:
        return y
    return y[:batch, :out_features]


@functools.partial(jax.jit, static_argnames=("activations", "out_features"))
def _fused_mlp_jit(x, params, activations, out_features):
    return _fused_mlp_impl(x, params, activations, out_features,
                           compute_dtype=jnp.bfloat16)


# ---------------------------------------------------------------------------
# Layer object (what Model.add_layer receives)
# ---------------------------------------------------------------------------
class PallasLinear:
    """Linear(+optional ReLU). Parameters stored zero-padded to 128 lanes,
    weights in bf16 (MXU-native), bias in f32 (f32 epilogue)."""

    def __init__(self, key, in_features: int, out_features: int,
                 apply_relu: bool):
        self.in_features = in_features
        self.out_features = out_features
        self.apply_relu = apply_relu
        self.training = True

        in_pad = _round_up(in_features, _LANE)
        out_pad = _round_up(out_features, _LANE)

        kw, kb = jax.random.split(key)
        scale = 1.0 / jnp.sqrt(jnp.float32(in_features))
        w = jax.random.normal(kw, (in_features, out_features),
                              jnp.float32) * scale
        b = jax.random.normal(kb, (1, out_features), jnp.float32) * 0.01

        # Zero-padding keeps padded lanes inert through every downstream layer.
        self.w = jnp.pad(w, ((0, in_pad - in_features),
                             (0, out_pad - out_features))).astype(jnp.bfloat16)
        self.b = jnp.pad(b, ((0, 0), (0, out_pad - out_features)))

    def train(self, mode: bool = True):
        self.training = mode

    def __call__(self, x):
        # Standalone path: single-layer "fusion" through the same kernel.
        return _fused_mlp_jit(x, ((self.w, self.b),),
                              activations=(self.apply_relu,),
                              out_features=self.out_features)


# ---------------------------------------------------------------------------
# Model: sequential container mirroring sparseypy's Model semantics
# ---------------------------------------------------------------------------
class Model:
    """Sequential container: forward() applies Layer_0 ... Layer_{N-1}."""

    def __init__(self):
        self.num_layers = 0
        self._layers = {}

    def add_layer(self, layer) -> None:
        self._layers[f"Layer_{self.num_layers}"] = layer
        self.num_layers += 1

    def train(self, mode: bool = True) -> None:
        for layer in self._layers.values():
            layer.train(mode)

    def forward(self, x):
        layers = [self._layers[f"Layer_{i}"] for i in range(self.num_layers)]
        if layers and all(isinstance(l, PallasLinear) for l in layers):
            # Fuse the full chain into one jitted pallas_call.
            params = tuple((l.w, l.b) for l in layers)
            activations = tuple(l.apply_relu for l in layers)
            return _fused_mlp_jit(x, params, activations=activations,
                                  out_features=layers[-1].out_features)
        # Fallback: generic sequential application (non-PallasLinear layers).
        for layer in layers:
            x = layer(x)
        return x

    __call__ = forward


# ---------------------------------------------------------------------------
# Demo
# ---------------------------------------------------------------------------
if __name__ == "__main__":
    key = jax.random.PRNGKey(0)
    k_in, k_l0, k_l1 = jax.random.split(key, 3)

    batch, d_in, d_hidden, d_out = 8, 32, 64, 32
    x = jax.random.normal(k_in, (batch, d_in), jnp.float32)

    model = Model()
    model.add_layer(PallasLinear(k_l0, d_in, d_hidden, apply_relu=True))
    model.add_layer(PallasLinear(k_l1, d_hidden, d_out, apply_relu=False))
    model.train(False)

    out = model(x)
    jax.block_until_ready(out)
    assert out.shape == (batch, d_out)

    # Reference check against plain JAX using the same bf16 weights
    # (sliced back to true feature dims), f32 accumulation.
    l0, l1 = model._layers["Layer_0"], model._layers["Layer_1"]
    w0 = l0.w[:d_in, :d_hidden]
    b0 = l0.b[:, :d_hidden]
    w1 = l1.w[:d_hidden, :d_out]
    b1 = l1.b[:, :d_out]
    h_ref = jnp.maximum(
        jnp.dot(x.astype(jnp.bfloat16), w0,
                preferred_element_type=jnp.float32) + b0, 0.0)
    ref = jnp.dot(h_ref.astype(jnp.bfloat16), w1,
                  preferred_element_type=jnp.float32) + b1
    assert jnp.allclose(out, ref, atol=2e-2, rtol=2e-2), (
        float(jnp.max(jnp.abs(out - ref))))

    print("KERNEL_OK")
</pallas_src>

<mosaic_0001>
module attributes {stable_mosaic.version = 11 : i64} {
  func.func @_fused_mlp_kernel(%arg0: i32, %arg1: memref<16x128xf32, #tpu.memory_space<vmem>>, %arg2: memref<128x128xbf16, #tpu.memory_space<vmem>>, %arg3: memref<1x128xf32, #tpu.memory_space<vmem>>, %arg4: memref<128x128xbf16, #tpu.memory_space<vmem>>, %arg5: memref<1x128xf32, #tpu.memory_space<vmem>>, %arg6: memref<16x128xf32, #tpu.memory_space<vmem>>) attributes {dimension_semantics = [#tpu.dimension_semantics<parallel>], iteration_bounds = array<i64: 1>, scalar_prefetch = 0 : i64, scratch_operands = 0 : i64, tpu.core_type = #tpu.core_type<tc>, window_params = [{transform_indices = @transform_0, window_bounds = array<i64: 16, 128>}, {pipeline_mode = #tpu.pipeline_mode<synchronous>, transform_indices = @transform_1, window_bounds = array<i64: 128, 128>}, {pipeline_mode = #tpu.pipeline_mode<synchronous>, transform_indices = @transform_2, window_bounds = array<i64: 1, 128>}, {pipeline_mode = #tpu.pipeline_mode<synchronous>, transform_indices = @transform_3, window_bounds = array<i64: 128, 128>}, {pipeline_mode = #tpu.pipeline_mode<synchronous>, transform_indices = @transform_4, window_bounds = array<i64: 1, 128>}, {transform_indices = @transform_5, window_bounds = array<i64: 16, 128>}]} {
    %c0 = arith.constant 0 : index
    %c0_0 = arith.constant 0 : index
    %0 = vector.load %arg1[%c0, %c0_0] : memref<16x128xf32, #tpu.memory_space<vmem>>, vector<16x128xf32>
    %1 = arith.truncf %0 : vector<16x128xf32> to vector<16x128xbf16>
    %c0_1 = arith.constant 0 : index
    %c0_2 = arith.constant 0 : index
    %2 = vector.load %arg2[%c0_1, %c0_2] : memref<128x128xbf16, #tpu.memory_space<vmem>>, vector<128x128xbf16>
    %c0_3 = arith.constant 0 : index
    %c0_4 = arith.constant 0 : index
    %3 = vector.load %arg3[%c0_3, %c0_4] : memref<1x128xf32, #tpu.memory_space<vmem>>, vector<1x128xf32>
    %cst = arith.constant dense<0.000000e+00> : vector<16x128xf32>
    %4 = tpu.matmul %1, %2, %cst {dimension_numbers = #tpu.dot_dimension_numbers<[1], [0], [0], [1], [0, 0, 1, 1], [], []>} : vector<16x128xbf16>, vector<128x128xbf16>, vector<16x128xf32> -> vector<16x128xf32>
    %5 = vector.broadcast %3 : vector<1x128xf32> to vector<16x128xf32>
    %6 = arith.addf %4, %5 : vector<16x128xf32>
    %cst_5 = arith.constant 0.000000e+00 : f32
    %7 = vector.broadcast %cst_5 : f32 to vector<16x128xf32>
    %8 = arith.maximumf %6, %7 : vector<16x128xf32>
    %9 = arith.truncf %8 : vector<16x128xf32> to vector<16x128xbf16>
    %c0_6 = arith.constant 0 : index
    %c0_7 = arith.constant 0 : index
    %10 = vector.load %arg4[%c0_6, %c0_7] : memref<128x128xbf16, #tpu.memory_space<vmem>>, vector<128x128xbf16>
    %c0_8 = arith.constant 0 : index
    %c0_9 = arith.constant 0 : index
    %11 = vector.load %arg5[%c0_8, %c0_9] : memref<1x128xf32, #tpu.memory_space<vmem>>, vector<1x128xf32>
    %cst_10 = arith.constant dense<0.000000e+00> : vector<16x128xf32>
    %12 = tpu.matmul %9, %10, %cst_10 {dimension_numbers = #tpu.dot_dimension_numbers<[1], [0], [0], [1], [0, 0, 1, 1], [], []>} : vector<16x128xbf16>, vector<128x128xbf16>, vector<16x128xf32> -> vector<16x128xf32>
    %13 = vector.broadcast %11 : vector<1x128xf32> to vector<16x128xf32>
    %14 = arith.addf %12, %13 : vector<16x128xf32>
    %c0_11 = arith.constant 0 : index
    %c0_12 = arith.constant 0 : index
    %15 = vector.load %arg6[%c0_11, %c0_12] : memref<16x128xf32, #tpu.memory_space<vmem>>, vector<16x128xf32>
    tpu.vector_store %arg6[%c0_11, %c0_12], %14 {strides = array<i32>} : memref<16x128xf32, #tpu.memory_space<vmem>>, vector<16x128xf32>,
    return
  }
  func.func @transform_0(%arg0: i32) -> (i32, i32) {
    %c0_i32 = arith.constant 0 : i32
    %c0_i32_0 = arith.constant 0 : i32
    return %arg0, %c0_i32 : i32, i32
  }
  func.func @transform_1(%arg0: i32) -> (i32, i32) {
    %c0_i32 = arith.constant 0 : i32
    %c0_i32_0 = arith.constant 0 : i32
    %c0_i32_1 = arith.constant 0 : i32
    return %c0_i32, %c0_i32_0 : i32, i32
  }
  func.func @transform_2(%arg0: i32) -> (i32, i32) {
    %c0_i32 = arith.constant 0 : i32
    %c0_i32_0 = arith.constant 0 : i32
    %c0_i32_1 = arith.constant 0 : i32
    return %c0_i32, %c0_i32_0 : i32, i32
  }
  func.func @transform_3(%arg0: i32) -> (i32, i32) {
    %c0_i32 = arith.constant 0 : i32
    %c0_i32_0 = arith.constant 0 : i32
    %c0_i32_1 = arith.constant 0 : i32
    return %c0_i32, %c0_i32_0 : i32, i32
  }
  func.func @transform_4(%arg0: i32) -> (i32, i32) {
    %c0_i32 = arith.constant 0 : i32
    %c0_i32_0 = arith.constant 0 : i32
    %c0_i32_1 = arith.constant 0 : i32
    return %c0_i32, %c0_i32_0 : i32, i32
  }
  func.func @transform_5(%arg0: i32) -> (i32, i32) {
    %c0_i32 = arith.constant 0 : i32
    %c0_i32_0 = arith.constant 0 : i32
    return %arg0, %c0_i32 : i32, i32
  }
}

</mosaic_0001>

<llo_original>
// kernel: _fused_mlp_jit.1
$region0: #{_fused_mlp_jit.1}
  #allocation0 [shape = 'u32[]', space=smem, size = 0x4, offset = 0x4, fixed_abs, tag = 'smem constant byte address 0x4 - core index']
  #allocation1 [shape = 'u32[144,128]{1,0:T(1,128)}', space=vmem, size = 0x12000, scoped, tag = 'internal scratch']
  %s0 = inlined_call_operand.vmem [shape: f32[16,128], index: 0, kind: input, shape index: {}]
  %s1 = inlined_call_operand.hbm [shape: bf16[128,128], index: 1, kind: input, shape index: {}]
  %s2 = inlined_call_operand.vmem [shape: f32[1,128], index: 2, kind: input, shape index: {}]
  %s3 = inlined_call_operand.hbm [shape: bf16[128,128], index: 3, kind: input, shape index: {}]
  %s4 = inlined_call_operand.vmem [shape: f32[1,128], index: 4, kind: input, shape index: {}]
  %s5 = inlined_call_operand.vmem [shape: f32[16,128], index: 5, kind: output, shape index: {}]
  %s6 = sld [smem:[#allocation0]]
  $region38: #{_fused_mlp_jit.1} parent=0
    _
  %s8 = ssub.s32 1, %s6
  %s9 = scalar_select 0, %s8, %s6
  $region1: #{_fused_mlp_jit.1} parent=0
    #allocation2 [shape = 'u8[32768]{0}', space=vmem, size = 0x8000, scoped, tag = 'input window, operand 1, single buffered']
    #allocation3 [shape = 's32[1]{0}', space=sflag, size = 0x4, scoped, tag = 'scoped memory for _fused_mlp_jit.1']
    #allocation4 [shape = 'u8[32768]{0}', space=vmem, size = 0x8000, scoped, tag = 'input window, operand 3, single buffered']
    #allocation5 [shape = 's32[1]{0}', space=sflag, size = 0x4, scoped, tag = 'scoped memory for _fused_mlp_jit.1']
    %10 = vsyncpa [#allocation3], 0
    %11 = vsyncpa [#allocation5], 0
    // Predicated region
    $region2: #{_fused_mlp_jit.1} parent=1 // pred_check
      _
    $region3: #{_fused_mlp_jit.1} parent=1 // pred_check_branch
      %13 = sbr.rel (0) target = $region5
    $region4: #{_fused_mlp_jit.1} parent=1 // pred_region
      _
    $region5: #{_fused_mlp_jit.1} parent=1 // pred_fallthru
      _
    // Predicated region
    $region6: #{_fused_mlp_jit.1} parent=1 // pred_check
      _
    $region7: #{_fused_mlp_jit.1} parent=1 // pred_check_branch
      %15 = sbr.rel (0) target = $region9
    $region8: #{_fused_mlp_jit.1} parent=1 // pred_region
      %s17 = ssub.s32 1024, 1024
      %18 = vsyncadd [#allocation3], %s17
      %s19 = sshll.u32 [#allocation2], 4
      %s20 = int_to_ptr.vmem [resolvable:$true] %s19
      %25 = dma.hbm_to_vmem [thread:$0]  %s1, 1024, %s20, [#allocation3], 64, 64, 4
    $region9: #{_fused_mlp_jit.1} parent=1 // pred_fallthru
      _
    // Predicated region
    $region10: #{_fused_mlp_jit.1} parent=1 // pred_check
      _
    $region11: #{_fused_mlp_jit.1} parent=1 // pred_check_branch
      %27 = sbr.rel (0) target = $region13
    $region12: #{_fused_mlp_jit.1} parent=1 // pred_region
      _
    $region13: #{_fused_mlp_jit.1} parent=1 // pred_fallthru
      _
    // Predicated region
    $region14: #{_fused_mlp_jit.1} parent=1 // pred_check
      _
    $region15: #{_fused_mlp_jit.1} parent=1 // pred_check_branch
      %29 = sbr.rel (0) target = $region17
    $region16: #{_fused_mlp_jit.1} parent=1 // pred_region
      %s31 = ssub.s32 1024, 1024
      %32 = vsyncadd [#allocation5], %s31
      %s33 = sshll.u32 [#allocation4], 4
      %s34 = int_to_ptr.vmem [resolvable:$true] %s33
      %39 = dma.hbm_to_vmem [thread:$0]  %s3, 1024, %s34, [#allocation5], 64, 64, 4
    $region17: #{_fused_mlp_jit.1} parent=1 // pred_fallthru
      _
    // Predicated region
    $region18: #{_fused_mlp_jit.1} parent=1 // pred_check
      _
    $region19: #{_fused_mlp_jit.1} parent=1 // pred_check_branch
      %41 = sbr.rel (0) target = $region21
    $region20: #{_fused_mlp_jit.1} parent=1 // pred_region
      _
    $region21: #{_fused_mlp_jit.1} parent=1 // pred_fallthru
      _
    // Predicated region
    $region22: #{_fused_mlp_jit.1} parent=1 // pred_check
      _
    $region23: #{_fused_mlp_jit.1} parent=1 // pred_check_branch
      %43 = sbr.rel (0) target = $region25
    $region24: #{_fused_mlp_jit.1} parent=1 // pred_region
      %44 = dma.done [#allocation3], 1024
    $region25: #{_fused_mlp_jit.1} parent=1 // pred_fallthru
      _
    // Predicated region
    $region26: #{_fused_mlp_jit.1} parent=1 // pred_check
      _
    $region27: #{_fused_mlp_jit.1} parent=1 // pred_check_branch
      %46 = sbr.rel (0) target = $region29
    $region28: #{_fused_mlp_jit.1} parent=1 // pred_region
      %47 = dma.done [#allocation5], 1024
    $region29: #{_fused_mlp_jit.1} parent=1 // pred_fallthru
      _
    %v49 = vld [vmem:[%s0] sm:$0xff]
    %v50 = vld [vmem:[%s0 + $0x8] sm:$0xff]
    %v51 = vpack.c.bf16 %v50, %v49
    %v52 = vld [vmem:[#allocation2] sm:$0xf]
    %v53 = vld [vmem:[#allocation2 + $0x4] sm:$0xf]
    %v54 = vld [vmem:[#allocation2 + $0x8] sm:$0xf]
    %v55 = vld [vmem:[#allocation2 + $0xc] sm:$0xf]
    %v56 = vld [vmem:[#allocation2 + $0x10] sm:$0xf]
    %v57 = vld [vmem:[#allocation2 + $0x14] sm:$0xf]
    %v58 = vld [vmem:[#allocation2 + $0x18] sm:$0xf]
    %v59 = vld [vmem:[#allocation2 + $0x1c] sm:$0xf]
    %v60 = vld [vmem:[#allocation2 + $0x20] sm:$0xf]
    %v61 = vld [vmem:[#allocation2 + $0x24] sm:$0xf]
    %v62 = vld [vmem:[#allocation2 + $0x28] sm:$0xf]
    %v63 = vld [vmem:[#allocation2 + $0x2c] sm:$0xf]
    %v64 = vld [vmem:[#allocation2 + $0x30] sm:$0xf]
    %v65 = vld [vmem:[#allocation2 + $0x34] sm:$0xf]
    %v66 = vld [vmem:[#allocation2 + $0x38] sm:$0xf]
    %v67 = vld [vmem:[#allocation2 + $0x3c] sm:$0xf]
    %v68 = vld [vmem:[%s2] sm:$0x1]
    %v70 = vlaneseq
    %v71 = vshrl.u32 %v70, 7
    %v72 = vsub.s32 0, %v71
    %v73 = vrot.slane %v68, %v72
    %v91 = vunpack.c.l.b16 %v52
    %v92 = vunpack.c.l.b16 %v53
    %v93 = vunpack.c.l.b16 %v54
    %v94 = vunpack.c.l.b16 %v55
    %v95 = vunpack.c.l.b16 %v56
    %v96 = vunpack.c.l.b16 %v57
    %v97 = vunpack.c.l.b16 %v58
    %v98 = vunpack.c.l.b16 %v59
    %v99 = vunpack.c.l.b16 %v60
    %v100 = vunpack.c.l.b16 %v61
    %v101 = vunpack.c.l.b16 %v62
    %v102 = vunpack.c.l.b16 %v63
    %v103 = vunpack.c.l.b16 %v64
    %v104 = vunpack.c.l.b16 %v65
    %v105 = vunpack.c.l.b16 %v66
    %v106 = vunpack.c.l.b16 %v67
    %v107 = vpack.c.b16 %v92, %v91
    %v108 = vpack.c.b16 %v94, %v93
    %v109 = vpack.c.b16 %v96, %v95
    %v110 = vpack.c.b16 %v98, %v97
    %v111 = vpack.c.b16 %v100, %v99
    %v112 = vpack.c.b16 %v102, %v101
    %v113 = vpack.c.b16 %v104, %v103
    %v114 = vpack.c.b16 %v106, %v105
    %123 = vmatprep.subr.bf16.mxu0 0
    %124 = vmatpush1.bf16.msra.mxu0 %v107
    %125 = vmatprep.subr.bf16.mxu0 0
    %126 = vmatpush1.bf16.msra.mxu0 %v108
    %127 = vmatprep.subr.bf16.mxu0 0
    %128 = vmatpush1.bf16.msra.mxu0 %v109
    %129 = vmatprep.subr.bf16.mxu0 0
    %130 = vmatpush1.bf16.msra.mxu0 %v110
    %131 = vmatprep.subr.bf16.mxu0 0
    %132 = vmatpush1.bf16.msra.mxu0 %v111
    %133 = vmatprep.subr.bf16.mxu0 0
    %134 = vmatpush1.bf16.msra.mxu0 %v112
    %135 = vmatprep.subr.bf16.mxu0 0
    %136 = vmatpush1.bf16.msra.mxu0 %v113
    %137 = vmatprep.subr.bf16.mxu0 0
    %138 = vmatpush1.bf16.msra.mxu0 %v114
    %139 = vmatprep.subr.bf16.mxu0 0
    %140 = vmatpush1.bf16.msra.mxu0 0
    %141 = vmatprep.subr.bf16.mxu0 0
    %142 = vmatpush1.bf16.msra.mxu0 0
    %143 = vmatprep.subr.bf16.mxu0 0
    %144 = vmatpush1.bf16.msra.mxu0 0
    %145 = vmatprep.subr.bf16.mxu0 0
    %146 = vmatpush1.bf16.msra.mxu0 0
    %147 = vmatprep.subr.bf16.mxu0 0
    %148 = vmatpush1.bf16.msra.mxu0 0
    %149 = vmatprep.subr.bf16.mxu0 0
    %150 = vmatpush1.bf16.msra.mxu0 0
    %151 = vmatprep.subr.bf16.mxu0 0
    %152 = vmatpush1.bf16.msra.mxu0 0
    %153 = vmatprep.subr.bf16.mxu0 0
    %154 = vmatpush1.bf16.msra.mxu0 0
    %155 = vmatprep.mubr.bf16.mxu0 0
    %156 = vmatmul.mubr.bf16.gmra.mrb[0].mxu0 %v51
    %v157 = vpop.f32.mrb[0].mxu0
    %v158 = vadd.f32 %v73, %v157
    %v159 = vpop.f32.mrb[0].mxu0
    %v160 = vpop.f32.mrb[0].mxu0
    %v161 = vadd.f32 %v73, %v160
    %v162 = vpop.f32.mrb[0].mxu0
    %163 = vdwg.mxu0
    %v164 = vmax.f32 %v158, 0.0
    %v165 = vmax.f32 %v161, 0.0
    %v166 = vpack.c.bf16 %v165, %v164
    %v167 = vld [vmem:[#allocation4] sm:$0xf]
    %v168 = vld [vmem:[#allocation4 + $0x4] sm:$0xf]
    %v169 = vld [vmem:[#allocation4 + $0x8] sm:$0xf]
    %v170 = vld [vmem:[#allocation4 + $0xc] sm:$0xf]
    %v171 = vld [vmem:[#allocation4 + $0x10] sm:$0xf]
    %v172 = vld [vmem:[#allocation4 + $0x14] sm:$0xf]
    %v173 = vld [vmem:[#allocation4 + $0x18] sm:$0xf]
    %v174 = vld [vmem:[#allocation4 + $0x1c] sm:$0xf]
    %v175 = vld [vmem:[#allocation4 + $0x20] sm:$0xf]
    %v176 = vld [vmem:[#allocation4 + $0x24] sm:$0xf]
    %v177 = vld [vmem:[#allocation4 + $0x28] sm:$0xf]
    %v178 = vld [vmem:[#allocation4 + $0x2c] sm:$0xf]
    %v179 = vld [vmem:[#allocation4 + $0x30] sm:$0xf]
    %v180 = vld [vmem:[#allocation4 + $0x34] sm:$0xf]
    %v181 = vld [vmem:[#allocation4 + $0x38] sm:$0xf]
    %v182 = vld [vmem:[#allocation4 + $0x3c] sm:$0xf]
    %v183 = vld [vmem:[%s4] sm:$0x1]
    %v185 = vlaneseq
    %v186 = vshrl.u32 %v185, 7
    %v187 = vsub.s32 0, %v186
    %v188 = vrot.slane %v183, %v187
    %v206 = vunpack.c.l.b16 %v167
    %v207 = vunpack.c.l.b16 %v168
    %v208 = vunpack.c.l.b16 %v169
    %v209 = vunpack.c.l.b16 %v170
    %v210 = vunpack.c.l.b16 %v171
    %v211 = vunpack.c.l.b16 %v172
    %v212 = vunpack.c.l.b16 %v173
    %v213 = vunpack.c.l.b16 %v174
    %v214 = vunpack.c.l.b16 %v175
    %v215 = vunpack.c.l.b16 %v176
    %v216 = vunpack.c.l.b16 %v177
    %v217 = vunpack.c.l.b16 %v178
    %v218 = vunpack.c.l.b16 %v179
    %v219 = vunpack.c.l.b16 %v180
    %v220 = vunpack.c.l.b16 %v181
    %v221 = vunpack.c.l.b16 %v182
    %v222 = vpack.c.b16 %v207, %v206
    %v223 = vpack.c.b16 %v209, %v208
    %v224 = vpack.c.b16 %v211, %v210
    %v225 = vpack.c.b16 %v213, %v212
    %v226 = vpack.c.b16 %v215, %v214
    %v227 = vpack.c.b16 %v217, %v216
    %v228 = vpack.c.b16 %v219, %v218
    %v229 = vpack.c.b16 %v221, %v220
    %238 = vmatprep.subr.bf16.mxu0 0
    %239 = vmatpush1.bf16.msra.mxu0 %v222
    %240 = vmatprep.subr.bf16.mxu0 0
    %241 = vmatpush1.bf16.msra.mxu0 %v223
    %242 = vmatprep.subr.bf16.mxu0 0
    %243 = vmatpush1.bf16.msra.mxu0 %v224
    %244 = vmatprep.subr.bf16.mxu0 0
    %245 = vmatpush1.bf16.msra.mxu0 %v225
    %246 = vmatprep.subr.bf16.mxu0 0
    %247 = vmatpush1.bf16.msra.mxu0 %v226
    %248 = vmatprep.subr.bf16.mxu0 0
    %249 = vmatpush1.bf16.msra.mxu0 %v227
    %250 = vmatprep.subr.bf16.mxu0 0
    %251 = vmatpush1.bf16.msra.mxu0 %v228
    %252 = vmatprep.subr.bf16.mxu0 0
    %253 = vmatpush1.bf16.msra.mxu0 %v229
    %254 = vmatprep.subr.bf16.mxu0 0
    %255 = vmatpush1.bf16.msra.mxu0 0
    %256 = vmatprep.subr.bf16.mxu0 0
    %257 = vmatpush1.bf16.msra.mxu0 0
    %258 = vmatprep.subr.bf16.mxu0 0
    %259 = vmatpush1.bf16.msra.mxu0 0
    %260 = vmatprep.subr.bf16.mxu0 0
    %261 = vmatpush1.bf16.msra.mxu0 0
    %262 = vmatprep.subr.bf16.mxu0 0
    %263 = vmatpush1.bf16.msra.mxu0 0
    %264 = vmatprep.subr.bf16.mxu0 0
    %265 = vmatpush1.bf16.msra.mxu0 0
    %266 = vmatprep.subr.bf16.mxu0 0
    %267 = vmatpush1.bf16.msra.mxu0 0
    %268 = vmatprep.subr.bf16.mxu0 0
    %269 = vmatpush1.bf16.msra.mxu0 0
    %270 = vmatprep.mubr.bf16.mxu0 0
    %271 = vmatmul.mubr.bf16.gmra.mrb[0].mxu0 %v166
    %v272 = vpop.f32.mrb[0].mxu0
    %v273 = vadd.f32 %v188, %v272
    %v274 = vpop.f32.mrb[0].mxu0
    %v275 = vpop.f32.mrb[0].mxu0
    %v276 = vadd.f32 %v188, %v275
    %v277 = vpop.f32.mrb[0].mxu0
    %278 = vdwg.mxu0
    %279 = vst [vmem:[%s5] sm:$0xff] %v273
    %280 = vst [vmem:[%s5 + $0x8] sm:$0xff] %v276
    // Predicated region
    $region30: #{_fused_mlp_jit.1} parent=1 // pred_check
      _
    $region31: #{_fused_mlp_jit.1} parent=1 // pred_check_branch
      %282 = sbr.rel (0) target = $region33
    $region32: #{_fused_mlp_jit.1} parent=1 // pred_region
      _
    $region33: #{_fused_mlp_jit.1} parent=1 // pred_fallthru
      _
    // Predicated region
    $region34: #{_fused_mlp_jit.1} parent=1 // pred_check
      _
    $region35: #{_fused_mlp_jit.1} parent=1 // pred_check_branch
      %284 = sbr.rel (0) target = $region37
    $region36: #{_fused_mlp_jit.1} parent=1 // pred_region
      _
    $region37: #{_fused_mlp_jit.1} parent=1 // pred_fallthru
      _
    %285 = vsyncpa [#allocation3], 1
    %286 = vsyncpa [#allocation5], 1

</llo_original>
